<compile_context>
chip_gen: v5e
topology: v5e:2x2
jax: 0.10.0
libtpu: 0.0.40
codegen_flags: <defaults>
</compile_context>

<pallas_src>
import math

import jax
import jax.numpy as jnp
from jax.experimental import pallas as pl
from jax.experimental.pallas import tpu as pltpu

_LANES = 128
_MAX_BLOCK_BYTES = 3 * 1024 * 1024     # ~3 MiB x-block: near HBM roofline on v5e/v6e/v7x


def _cdiv(a, m):
    return (a + m - 1) // m


def _sublanes(dtype):
    # f32 -> 8, bf16/f16 -> 16, int8/fp8 -> 32 (sub-32-bit dtypes pack along sublanes)
    return 32 // jnp.dtype(dtype).itemsize


def sample_module_kernel(x_ref, c_ref, o_ref):
    # out = 2*x + c.  c is one (1, unit, 128) period of the folded constant
    # 2*(param + submodule.param), broadcast over the tile's leading axis.
    # Pure VPU work; the kernel is HBM-streaming bound.
    o_ref[...] = x_ref[...] * 2.0 + c_ref[...]


@jax.jit
def sample_module_forward(x, param, sub_param):
    B, R, C = x.shape
    assert param.shape == (R, C) and sub_param.shape == (R, C)
    dtype = x.dtype
    itemsize = jnp.dtype(dtype).itemsize
    pc = R * C                                    # 12
    n = B * pc

    # ---- fold the two parameters into one batch-invariant constant ---------
    c_small = (2.0 * (param.astype(jnp.float32) + sub_param.astype(jnp.float32))
               ).reshape(-1).astype(dtype)        # (12,)

    # ---- dtype-aware lane-dense layout --------------------------------------
    period = math.lcm(pc, _LANES) // _LANES       # 3 for pc = 12
    sublane = _sublanes(dtype)                    # 8 / 16 / 32
    unit = math.lcm(period, sublane)              # 24 / 48 / 96 rows of 128 lanes
    unit_elems = unit * _LANES
    assert unit % sublane == 0                    # packed-tile (sublane, 128) aligned
    # Resident-constant correctness: every unit (hence every tile) starts on a
    # multiple of the 12-element parameter period.
    assert unit_elems % pc == 0

    # ---- tile sizing: byte budget + >=2 grid steps when possible ------------
    U = _cdiv(n, unit_elems)                              # number of unit-blocks
    max_units = max(1, _MAX_BLOCK_BYTES // (unit_elems * itemsize))
    units_per_tile = max(1, min(max_units, _cdiv(U, 2)))  # >=2 steps whenever U >= 2
    grid = (_cdiv(U, units_per_tile),)                    # ragged last step is masked

    # ---- pad only to the unit boundary (<= unit_elems - 1 extra elements) ---
    n_slab = U * unit_elems
    x_flat = x.reshape(-1)
    if n_slab != n:
        x_flat = jnp.pad(x_flat, (0, n_slab - n))
    x_slab = x_flat.reshape(U, unit, _LANES)

    # One period of the constant: (1, unit, 128) ~= 12 KiB; constant index_map
    # below keeps it VMEM-resident across all grid steps.
    idx = jnp.arange(unit_elems, dtype=jnp.int32) % pc
    c_unit = c_small[idx].reshape(1, unit, _LANES)

    out_slab = pl.pallas_call(
        sample_module_kernel,
        out_shape=jax.ShapeDtypeStruct((U, unit, _LANES), dtype),
        grid_spec=pl.GridSpec(
            grid=grid,
            in_specs=[
                # x: streamed, one (units_per_tile, unit, 128) block per grid step
                pl.BlockSpec((units_per_tile, unit, _LANES), lambda i: (i, 0, 0)),
                # c: constant index_map -> fetched once, stays resident in VMEM
                pl.BlockSpec((1, unit, _LANES), lambda i: (0, 0, 0)),
            ],
            out_specs=pl.BlockSpec((units_per_tile, unit, _LANES),
                                   lambda i: (i, 0, 0)),
        ),
        compiler_params=pltpu.CompilerParams(
            dimension_semantics=("parallel",),    # shard tiles across TCs (v7x)
            vmem_limit_bytes=32 * 1024 * 1024,    # ~12 MiB used; headroom on every gen
        ),
    )(x_slab, c_unit)

    # Strip the (at most unit_elems-1) pad elements and restore (B, 3, 4).
    out_flat = out_slab.reshape(-1)
    if n_slab != n:
        out_flat = out_flat[:n]
    return out_flat.reshape(B, R, C)


def _reference(x, param, sub_param):
    # Plain-JAX mirror of SampleModule.forward (has_parity=True, has_submodule=True).
    sub = x + sub_param[None] * 2.0
    return x + param[None] * 2.0 + sub


if __name__ == "__main__":
    key = jax.random.PRNGKey(0)
    R, C = 3, 4

    # reset_parameters() with has_parity=True: param.fill_(1); submodule.param.fill_(1);
    # buffer.fill_(1) (registered buffer is not used in forward).
    param = jnp.ones((R, C), dtype=jnp.float32)
    sub_param = jnp.ones((R, C), dtype=jnp.float32)
    buffer = jnp.ones((4, 5), dtype=jnp.float32)   # unused in forward

    # B=2: canonical small case.  B=37: pad path.  B=700: multi-step grid with a
    # ragged last tile (exercises the cdiv grid + boundary masking).
    for B in (2, 37, 700):
        x = jax.random.normal(jax.random.fold_in(key, B), (B, R, C), dtype=jnp.float32)
        out = jax.block_until_ready(sample_module_forward(x, param, sub_param))
        ref = _reference(x, param, sub_param)
        assert out.shape == x.shape
        assert jnp.allclose(out, ref, atol=1e-6), f"mismatch vs reference (f32, B={B})"

    # bf16 case exercises the dtype-aware unit (48 rows) packed-tile path.
    xb = jax.random.normal(jax.random.fold_in(key, 9), (37, R, C)).astype(jnp.bfloat16)
    outb = jax.block_until_ready(
        sample_module_forward(xb, param.astype(jnp.bfloat16), sub_param.astype(jnp.bfloat16)))
    refb = _reference(xb.astype(jnp.float32), param, sub_param)
    assert outb.shape == xb.shape
    assert jnp.allclose(outb.astype(jnp.float32), refb, atol=5e-2), "mismatch vs reference (bf16)"

    print("KERNEL_OK")
</pallas_src>

<mosaic_0001>
module attributes {stable_mosaic.version = 11 : i64} {
  func.func @sample_module_kernel(%arg0: i32, %arg1: memref<1x24x128xf32, #tpu.memory_space<vmem>>, %arg2: memref<1x24x128xf32, #tpu.memory_space<vmem>>, %arg3: memref<1x24x128xf32, #tpu.memory_space<vmem>>) attributes {dimension_semantics = [#tpu.dimension_semantics<parallel>], iteration_bounds = array<i64: 1>, scalar_prefetch = 0 : i64, scratch_operands = 0 : i64, tpu.core_type = #tpu.core_type<tc>, window_params = [{transform_indices = @transform_0, window_bounds = array<i64: 1, 24, 128>}, {pipeline_mode = #tpu.pipeline_mode<synchronous>, transform_indices = @transform_1, window_bounds = array<i64: 1, 24, 128>}, {transform_indices = @transform_2, window_bounds = array<i64: 1, 24, 128>}]} {
    %c0 = arith.constant 0 : index
    %c0_0 = arith.constant 0 : index
    %c0_1 = arith.constant 0 : index
    %0 = vector.load %arg1[%c0, %c0_0, %c0_1] : memref<1x24x128xf32, #tpu.memory_space<vmem>>, vector<1x24x128xf32>
    %cst = arith.constant 2.000000e+00 : f32
    %1 = vector.broadcast %cst : f32 to vector<1x24x128xf32>
    %2 = arith.mulf %0, %1 : vector<1x24x128xf32>
    %c0_2 = arith.constant 0 : index
    %c0_3 = arith.constant 0 : index
    %c0_4 = arith.constant 0 : index
    %3 = vector.load %arg2[%c0_2, %c0_3, %c0_4] : memref<1x24x128xf32, #tpu.memory_space<vmem>>, vector<1x24x128xf32>
    %4 = arith.addf %2, %3 : vector<1x24x128xf32>
    %c0_5 = arith.constant 0 : index
    %c0_6 = arith.constant 0 : index
    %c0_7 = arith.constant 0 : index
    %5 = vector.load %arg3[%c0_5, %c0_6, %c0_7] : memref<1x24x128xf32, #tpu.memory_space<vmem>>, vector<1x24x128xf32>
    tpu.vector_store %arg3[%c0_5, %c0_6, %c0_7], %4 {strides = array<i32>} : memref<1x24x128xf32, #tpu.memory_space<vmem>>, vector<1x24x128xf32>,
    return
  }
  func.func @transform_0(%arg0: i32) -> (i32, i32, i32) {
    %c0_i32 = arith.constant 0 : i32
    %c0_i32_0 = arith.constant 0 : i32
    %c0_i32_1 = arith.constant 0 : i32
    return %arg0, %c0_i32, %c0_i32_0 : i32, i32, i32
  }
  func.func @transform_1(%arg0: i32) -> (i32, i32, i32) {
    %c0_i32 = arith.constant 0 : i32
    %c0_i32_0 = arith.constant 0 : i32
    %c0_i32_1 = arith.constant 0 : i32
    %c0_i32_2 = arith.constant 0 : i32
    return %c0_i32, %c0_i32_0, %c0_i32_1 : i32, i32, i32
  }
  func.func @transform_2(%arg0: i32) -> (i32, i32, i32) {
    %c0_i32 = arith.constant 0 : i32
    %c0_i32_0 = arith.constant 0 : i32
    %c0_i32_1 = arith.constant 0 : i32
    return %arg0, %c0_i32, %c0_i32_0 : i32, i32, i32
  }
}

</mosaic_0001>

<llo_original>
// kernel: sample_module_forward.1
$region0: #{sample_module_forward.1}
  #allocation0 [shape = 'u32[]', space=smem, size = 0x4, offset = 0x4, fixed_abs, tag = 'smem constant byte address 0x4 - core index']
  #allocation1 [shape = 'u32[72,128]{1,0:T(1,128)}', space=vmem, size = 0x9000, scoped, tag = 'internal scratch']
  %s0 = inlined_call_operand.vmem [shape: f32[1,24,128], index: 0, kind: input, shape index: {}]
  %s1 = inlined_call_operand.vmem [shape: f32[1,24,128], index: 1, kind: input, shape index: {}]
  %s2 = inlined_call_operand.vmem [shape: f32[1,24,128], index: 2, kind: output, shape index: {}]
  %s3 = sld [smem:[#allocation0]]
  $region18: #{sample_module_forward.1} parent=0
    _
  %s5 = ssub.s32 1, %s3
  %s6 = scalar_select 0, %s5, %s3
  // Predicated region
  $region2: #{sample_module_forward.1} parent=0 // pred_check
    _
  $region3: #{sample_module_forward.1} parent=0 // pred_check_branch
    %8 = sbr.rel (0) target = $region5
  $region4: #{sample_module_forward.1} parent=0 // pred_region
    _
  $region5: #{sample_module_forward.1} parent=0 // pred_fallthru
    _
  // Predicated region
  $region6: #{sample_module_forward.1} parent=0 // pred_check
    _
  $region7: #{sample_module_forward.1} parent=0 // pred_check_branch
    %10 = sbr.rel (0) target = $region9
  $region8: #{sample_module_forward.1} parent=0 // pred_region
    _
  $region9: #{sample_module_forward.1} parent=0 // pred_fallthru
    _
  %v11 = vld [vmem:[%s0] sm:$0xff]
  %v12 = vld [vmem:[%s0 + $0x8] sm:$0xff]
  %v13 = vld [vmem:[%s0 + $0x10] sm:$0xff]
  %v14 = vmul.f32 %v11, 2.0
  %v15 = vmul.f32 %v12, 2.0
  %v16 = vmul.f32 %v13, 2.0
  %v17 = vld [vmem:[%s1] sm:$0xff]
  %v18 = vld [vmem:[%s1 + $0x8] sm:$0xff]
  %v19 = vld [vmem:[%s1 + $0x10] sm:$0xff]
  %v20 = vadd.f32 %v14, %v17
  %v21 = vadd.f32 %v15, %v18
  %v22 = vadd.f32 %v16, %v19
  %23 = vst [vmem:[%s2] sm:$0xff] %v20
  %24 = vst [vmem:[%s2 + $0x8] sm:$0xff] %v21
  %25 = vst [vmem:[%s2 + $0x10] sm:$0xff] %v22
  // Predicated region
  $region10: #{sample_module_forward.1} parent=0 // pred_check
    _
  $region11: #{sample_module_forward.1} parent=0 // pred_check_branch
    %27 = sbr.rel (0) target = $region13
  $region12: #{sample_module_forward.1} parent=0 // pred_region
    _
  $region13: #{sample_module_forward.1} parent=0 // pred_fallthru
    _
  // Predicated region
  $region14: #{sample_module_forward.1} parent=0 // pred_check
    _
  $region15: #{sample_module_forward.1} parent=0 // pred_check_branch
    %29 = sbr.rel (0) target = $region17
  $region16: #{sample_module_forward.1} parent=0 // pred_region
    _
  $region17: #{sample_module_forward.1} parent=0 // pred_fallthru
    _

</llo_original>
